<compile_context>
chip_gen: v7x
topology: tpu7x:2x2x1
jax: 0.10.0
libtpu: 0.0.40
codegen_flags: <defaults>
</compile_context>

<pallas_src>
import math
from functools import partial

import jax
import jax.numpy as jnp
from jax import lax
from jax.experimental import pallas as pl
from jax.experimental.pallas import tpu as pltpu


def _l2_normalize(v, eps=1e-12):
    # F.normalize(v, p=2, dim=-1, eps) == v / max(||v||, eps)
    #   == v * rsqrt(max(||v||^2, eps^2)) for non-degenerate rows.
    sumsq = jnp.sum(v * v, axis=-1, keepdims=True)
    return v * lax.rsqrt(jnp.maximum(sumsq, eps * eps))


def _vmem_capacity_bytes():
    """Per-core VMEM capacity (conservative fallback if the query fails)."""
    try:
        cap = getattr(pltpu.get_tpu_info(), "vmem_capacity_bytes", None)
        if cap:
            return int(cap)
    except Exception:
        pass
    return 64 * 1024 * 1024  # v7x per-TensorCore size; safe lower bound


def _select_tile_c(B, D, C, w_bytes, x_bytes, vmem_cap, tile_c=None):
    """Lane-dense class tile sized from a VMEM budget (or sanitized override)."""
    if C <= 128:
        return C  # single full block ("equal full dim" escape of (8,128) rule)
    c_cap = (C // 128) * 128  # largest multiple of 128 <= C (partial last blk)
    if tile_c is not None:
        return min(max(128, (int(tile_c) // 128) * 128), c_cap)
    budget = min(int(vmem_cap * 0.45), 40 << 20)
    fixed = 2 * B * D * x_bytes + 8 * B          # resident x_n + labels
    per_c = 2 * D * w_bytes + 2 * B * 4          # dbl-buffered W row + f32 out col
    tc = (budget - fixed) // max(per_c, 1)
    tc = max(128, min(int(tc), 2048))            # diminishing returns past ~2K
    return min((tc // 128) * 128, c_cap)


def _normalize_w_tile(w_ref, matmul_dtype):
    """Row-normalize a streamed (TILE_C, D) W tile; f32 only for the norm."""
    w32 = w_ref[...].astype(jnp.float32)
    inv = lax.rsqrt(jnp.maximum(jnp.sum(w32 * w32, axis=-1, keepdims=True),
                                1e-24))          # eps^2 of F.normalize
    return (w32 * inv).astype(matmul_dtype)


def _arcface_margin_kernel(x_ref, w_ref, label_ref, out_ref, *,
                           s, cos_m, sin_m, tile_c, matmul_dtype):
    """One (B, TILE_C) output tile: cosine logits + margin on the target col."""
    x_n = x_ref[...]                              # (B, D), pre-normalized
    w_n = _normalize_w_tile(w_ref, matmul_dtype)  # (TILE_C, D)

    # NT contraction over D: (B, D) x (TILE_C, D) -> (B, TILE_C), f32 acc.
    logits = lax.dot_general(
        x_n, w_n, dimension_numbers=(((1,), (1,)), ((), ())),
        preferred_element_type=jnp.float32)

    # Local one-hot without materializing class ids.
    local_label = label_ref[...] - pl.program_id(0) * tile_c     # (B, 1) int32
    one_hot = lax.broadcasted_iota(jnp.int32, logits.shape, 1) == local_label

    # Margin restricted to the target column: (B, 1) sqrt instead of
    # (B, TILE_C).  Rows whose target lies in another tile sum to 0 and the
    # resulting value is never selected.
    tgt_cos = jnp.sum(jnp.where(one_hot, logits, 0.0), axis=1, keepdims=True)
    tgt_cos = jnp.clip(tgt_cos, -1.0 + 1e-7, 1.0 - 1e-7)
    tgt_logit = tgt_cos * cos_m - jnp.sqrt(1.0 - tgt_cos * tgt_cos) * sin_m

    out_ref[...] = (jnp.where(one_hot, tgt_logit, logits) * s
                    ).astype(out_ref.dtype)


def _arcface_logits_kernel(x_ref, w_ref, out_ref, *, matmul_dtype):
    """Inference path (label=None): plain cosine logits, no margin, no scale."""
    w_n = _normalize_w_tile(w_ref, matmul_dtype)
    out_ref[...] = lax.dot_general(
        x_ref[...], w_n, dimension_numbers=(((1,), (1,)), ((), ())),
        preferred_element_type=jnp.float32).astype(out_ref.dtype)


def arcface_forward(x, W, label=None, s=30.0, m=0.5, *,
                    tile_c=None, matmul_dtype=jnp.bfloat16):
    """JAX wrapper mirroring ArcFace.forward(input, label)."""
    B, D = x.shape
    C, D2 = W.shape
    assert D == D2

    # Hoisted x normalization (done once, not once per class tile).
    x_n = _l2_normalize(x.astype(jnp.float32)).astype(matmul_dtype)

    # Stream W in the narrowest dtype the matmul will use (bf16 halves the
    # dominant HBM read); upcast to f32 inside the kernel only for the norm.
    if jnp.dtype(matmul_dtype).itemsize < jnp.dtype(W.dtype).itemsize:
        stream_dtype = jnp.dtype(matmul_dtype)
    else:
        stream_dtype = jnp.dtype(W.dtype)
    W_s = W if W.dtype == stream_dtype else W.astype(stream_dtype)

    w_bytes = stream_dtype.itemsize
    x_bytes = jnp.dtype(matmul_dtype).itemsize
    vmem_cap = _vmem_capacity_bytes()
    tile_c = _select_tile_c(B, D, C, w_bytes, x_bytes, vmem_cap, tile_c)

    grid = (pl.cdiv(C, tile_c),)  # last tile may be partial; no pad / no slice

    # VMEM budget: double-buffered W tile + double-buffered f32 out tile +
    # resident x + labels + headroom, floored at 32 MiB, capped per generation.
    need = (2 * tile_c * D * w_bytes + 2 * B * tile_c * 4
            + 2 * B * D * x_bytes + 8 * B + (2 << 20))
    vmem_limit = int(min(max(need, 32 << 20), vmem_cap * 0.8))

    out_shape = jax.ShapeDtypeStruct((B, C), jnp.float32)
    x_spec = pl.BlockSpec((B, D), lambda j: (0, 0))           # resident
    w_spec = pl.BlockSpec((tile_c, D), lambda j: (j, 0))      # streamed
    out_spec = pl.BlockSpec((B, tile_c), lambda j: (0, j))
    cparams = pltpu.CompilerParams(dimension_semantics=("parallel",),
                                   vmem_limit_bytes=vmem_limit)

    if label is None:
        return pl.pallas_call(
            partial(_arcface_logits_kernel, matmul_dtype=matmul_dtype),
            out_shape=out_shape,
            grid=grid,
            in_specs=[x_spec, w_spec],
            out_specs=out_spec,
            compiler_params=cparams,
        )(x_n, W_s)

    label2d = label.astype(jnp.int32).reshape(B, 1)
    lbl_spec = pl.BlockSpec((B, 1), lambda j: (0, 0))
    return pl.pallas_call(
        partial(_arcface_margin_kernel, s=float(s),
                cos_m=math.cos(m), sin_m=math.sin(m),
                tile_c=tile_c, matmul_dtype=matmul_dtype),
        out_shape=out_shape,
        grid=grid,
        in_specs=[x_spec, w_spec, lbl_spec],
        out_specs=out_spec,
        compiler_params=cparams,
    )(x_n, W_s, label2d)


def _reference(x, W, label, s, m):
    # Pure-JAX reference of the PyTorch forward.
    x_n = _l2_normalize(x)
    w_n = _l2_normalize(W)
    logits = x_n @ w_n.T
    theta = jnp.arccos(jnp.clip(logits, -1.0 + 1e-7, 1.0 - 1e-7))
    target = jnp.cos(theta + m)
    one_hot = jax.nn.one_hot(label, W.shape[0], dtype=logits.dtype)
    return (logits * (1 - one_hot) + target * one_hot) * s


if __name__ == "__main__":
    # batch, in_features, out_features (C=300 exercises partial last tiles).
    B, D, C = 8, 32, 300
    s_const, m_const = 30.0, 0.5

    key = jax.random.PRNGKey(0)
    kx, kw, kl = jax.random.split(key, 3)

    x = jax.random.normal(kx, (B, D), dtype=jnp.float32)

    # Xavier-uniform init for W (out_features, in_features), gain=1.
    bound = math.sqrt(6.0 / (D + C))
    W = jax.random.uniform(kw, (C, D), minval=-bound, maxval=bound,
                           dtype=jnp.float32)

    label = jax.random.randint(kl, (B,), 0, C, dtype=jnp.int32)

    ref = _reference(x, W, label, s_const, m_const)

    # Training path, f32 operands, explicit tile_c=128 -> 3-step grid with a
    # partial last class block (no pad, no output slice).
    out_f32 = arcface_forward(x, W, label, s=s_const, m=m_const,
                              tile_c=128, matmul_dtype=jnp.float32)
    out_f32 = jax.block_until_ready(out_f32)
    assert out_f32.shape == (B, C)
    assert jnp.allclose(out_f32, ref, atol=1e-4, rtol=1e-4)

    # Training path, default bf16-streamed W (half the dominant HBM stream),
    # auto tile selection (tile_c=256 here -> 2 grid steps, partial last).
    out_bf16 = arcface_forward(x, W, label, s=s_const, m=m_const)
    out_bf16 = jax.block_until_ready(out_bf16)
    assert out_bf16.shape == (B, C)
    # bf16 W storage + bf16 matmul operand rounding (f32 accumulation).
    assert float(jnp.max(jnp.abs(out_bf16 - ref))) < 0.5

    # Inference path (label=None -> raw cosine logits, no margin, no scale).
    logits = arcface_forward(x, W, None, tile_c=128, matmul_dtype=jnp.float32)
    logits = jax.block_until_ready(logits)
    ref_logits = _l2_normalize(x) @ _l2_normalize(W).T
    assert logits.shape == (B, C)
    assert jnp.allclose(logits, ref_logits, atol=1e-4, rtol=1e-4)

    print("KERNEL_OK")
</pallas_src>

<mosaic_0001>
module attributes {stable_mosaic.version = 11 : i64} {
  func.func @_arcface_margin_kernel(%arg0: i32, %arg1: memref<8x32xf32, #tpu.memory_space<vmem>>, %arg2: memref<128x32xf32, #tpu.memory_space<vmem>>, %arg3: memref<8x1xi32, #tpu.memory_space<vmem>>, %arg4: memref<8x128xf32, #tpu.memory_space<vmem>>) attributes {dimension_semantics = [#tpu.dimension_semantics<parallel>], iteration_bounds = array<i64: 3>, scalar_prefetch = 0 : i64, scratch_operands = 0 : i64, tpu.core_type = #tpu.core_type<tc>, window_params = [{pipeline_mode = #tpu.pipeline_mode<synchronous>, transform_indices = @transform_0, window_bounds = array<i64: 8, 32>}, {transform_indices = @transform_1, window_bounds = array<i64: 128, 32>}, {pipeline_mode = #tpu.pipeline_mode<synchronous>, transform_indices = @transform_2, window_bounds = array<i64: 8, 1>}, {transform_indices = @transform_3, window_bounds = array<i64: 8, 128>}]} {
    %c0 = arith.constant 0 : index
    %c0_0 = arith.constant 0 : index
    %0 = vector.load %arg1[%c0, %c0_0] : memref<8x32xf32, #tpu.memory_space<vmem>>, vector<8x32xf32>
    %c0_1 = arith.constant 0 : index
    %c0_2 = arith.constant 0 : index
    %1 = vector.load %arg2[%c0_1, %c0_2] : memref<128x32xf32, #tpu.memory_space<vmem>>, vector<128x32xf32>
    %2 = arith.mulf %1, %1 : vector<128x32xf32>
    %cst = arith.constant dense<0.000000e+00> : vector<128xf32>
    %3 = vector.multi_reduction <add>, %2, %cst [1] : vector<128x32xf32> to vector<128xf32>
    %4 = vector.shape_cast %3 : vector<128xf32> to vector<128x1xf32>
    %cst_3 = arith.constant 1.000000e-24 : f32
    %5 = vector.broadcast %cst_3 : f32 to vector<128x1xf32>
    %6 = arith.maximumf %4, %5 : vector<128x1xf32>
    %7 = math.rsqrt %6 : vector<128x1xf32>
    %8 = vector.broadcast %7 : vector<128x1xf32> to vector<128x32xf32>
    %9 = arith.mulf %1, %8 : vector<128x32xf32>
    %cst_4 = arith.constant dense<0.000000e+00> : vector<8x128xf32>
    %10 = tpu.matmul %0, %9, %cst_4 {dimension_numbers = #tpu.dot_dimension_numbers<[1], [1], [0], [0], [0, 0, 1, 0], [], []>} : vector<8x32xf32>, vector<128x32xf32>, vector<8x128xf32> -> vector<8x128xf32>
    %c0_5 = arith.constant 0 : index
    %c0_6 = arith.constant 0 : index
    %11 = vector.load %arg3[%c0_5, %c0_6] : memref<8x1xi32, #tpu.memory_space<vmem>>, vector<8x1xi32>
    %c128_i32 = arith.constant 128 : i32
    %12 = arith.muli %arg0, %c128_i32 : i32
    %13 = vector.broadcast %12 : i32 to vector<8x1xi32>
    %14 = arith.subi %11, %13 : vector<8x1xi32>
    %15 = tpu.iota {dimensions = array<i32: 1>} : vector<8x128xi32>
    %16 = vector.broadcast %14 : vector<8x1xi32> to vector<8x128xi32>
    %17 = arith.cmpi eq, %15, %16 : vector<8x128xi32>
    %cst_7 = arith.constant 0.000000e+00 : f32
    %18 = vector.broadcast %cst_7 : f32 to vector<8x128xf32>
    %19 = arith.select %17, %10, %18 : vector<8x128xi1>, vector<8x128xf32>
    %cst_8 = arith.constant dense<0.000000e+00> : vector<8xf32>
    %20 = vector.multi_reduction <add>, %19, %cst_8 [1] : vector<8x128xf32> to vector<8xf32>
    %21 = vector.shape_cast %20 : vector<8xf32> to vector<8x1xf32>
    %cst_9 = arith.constant -0.99999988 : f32
    %cst_10 = arith.constant 0.99999988 : f32
    %22 = vector.broadcast %cst_9 : f32 to vector<8x1xf32>
    %23 = arith.maximumf %22, %21 : vector<8x1xf32>
    %24 = vector.broadcast %cst_10 : f32 to vector<8x1xf32>
    %25 = arith.minimumf %24, %23 : vector<8x1xf32>
    %cst_11 = arith.constant 0.87758255 : f32
    %26 = vector.broadcast %cst_11 : f32 to vector<8x1xf32>
    %27 = arith.mulf %25, %26 : vector<8x1xf32>
    %28 = arith.mulf %25, %25 : vector<8x1xf32>
    %cst_12 = arith.constant 1.000000e+00 : f32
    %29 = vector.broadcast %cst_12 : f32 to vector<8x1xf32>
    %30 = arith.subf %29, %28 : vector<8x1xf32>
    %31 = math.sqrt %30 : vector<8x1xf32>
    %cst_13 = arith.constant 0.47942555 : f32
    %32 = vector.broadcast %cst_13 : f32 to vector<8x1xf32>
    %33 = arith.mulf %31, %32 : vector<8x1xf32>
    %34 = arith.subf %27, %33 : vector<8x1xf32>
    %35 = vector.shape_cast %34 : vector<8x1xf32> to vector<8x1xf32>
    %36 = vector.broadcast %35 : vector<8x1xf32> to vector<8x128xf32>
    %37 = arith.select %17, %36, %10 : vector<8x128xi1>, vector<8x128xf32>
    %cst_14 = arith.constant 3.000000e+01 : f32
    %38 = vector.broadcast %cst_14 : f32 to vector<8x128xf32>
    %39 = arith.mulf %37, %38 : vector<8x128xf32>
    %c0_15 = arith.constant 0 : index
    %c0_16 = arith.constant 0 : index
    %40 = vector.load %arg4[%c0_15, %c0_16] : memref<8x128xf32, #tpu.memory_space<vmem>>, vector<8x128xf32>
    tpu.vector_store %arg4[%c0_15, %c0_16], %39 {strides = array<i32>} : memref<8x128xf32, #tpu.memory_space<vmem>>, vector<8x128xf32>,
    return
  }
  func.func @transform_0(%arg0: i32) -> (i32, i32) {
    %c0_i32 = arith.constant 0 : i32
    %c0_i32_0 = arith.constant 0 : i32
    %c0_i32_1 = arith.constant 0 : i32
    return %c0_i32, %c0_i32_0 : i32, i32
  }
  func.func @transform_1(%arg0: i32) -> (i32, i32) {
    %c0_i32 = arith.constant 0 : i32
    %c0_i32_0 = arith.constant 0 : i32
    return %arg0, %c0_i32 : i32, i32
  }
  func.func @transform_2(%arg0: i32) -> (i32, i32) {
    %c0_i32 = arith.constant 0 : i32
    %c0_i32_0 = arith.constant 0 : i32
    %c0_i32_1 = arith.constant 0 : i32
    return %c0_i32, %c0_i32_0 : i32, i32
  }
  func.func @transform_3(%arg0: i32) -> (i32, i32) {
    %c0_i32 = arith.constant 0 : i32
    %c0_i32_0 = arith.constant 0 : i32
    return %c0_i32, %arg0 : i32, i32
  }
}

</mosaic_0001>

<llo_original>
// kernel: tpu_custom_call.1
$region0: #{tpu_custom_call.1}
  #allocation0 [shape = 'u32[]', space=smem, size = 0x4, offset = 0x4, fixed_abs, tag = 'smem constant byte address 0x4 - core index']
  #allocation1 [shape = 'u32[144,128]{1,0:T(1,128)}', space=vmem, size = 0x12000, scoped, tag = 'internal scratch']
  %s0 = inlined_call_operand.vmem [shape: f32[8,32], index: 0, kind: input, shape index: {}]
  %s1 = inlined_call_operand.vmem [shape: f32[300,32], index: 1, kind: input, shape index: {}]
  %s2 = inlined_call_operand.vmem [shape: s32[8,1], index: 2, kind: input, shape index: {}]
  %s3 = inlined_call_operand.hbm [shape: f32[8,300], index: 3, kind: output, shape index: {}]
  %s4 = sld [smem:[#allocation0]]
  $region45: #{tpu_custom_call.1} parent=0
    _
  %s6 = ssub.s32 1, %s4
  %s7 = scalar_select 0, %s6, %s4
  $region1: #{tpu_custom_call.1} parent=0
    #allocation2 [shape = 'u8[8192]{0}', space=vmem, size = 0x2000, scoped, tag = 'output window, operand 0']
    #allocation3 [shape = 's32[2]{0}', space=sflag, size = 0x8, scoped, tag = 'scoped memory for tpu_custom_call.1']
    %8 = vsyncpa [#allocation3], 0
    %s9 = scalar_lea.sflag [#allocation3], 1
    %10 = vsyncpa %s9, 0
    loop: start=0, step=1, limit=5
    $region2: #{tpu_custom_call.1} parent=1 // loop_pre_header
      _
    $region3: #{tpu_custom_call.1} parent=1 // loop_header
      %s12 = sphi 0, %s16
      %p13 = scmp.ge.s32.totalorder %s12, 5
      %s20 = sphi 0, %s20
      %s22 = sphi 0, %s20
      %s23 = sphi 0, %s22
      %s37 = sphi 0, %s23
      %s43 = sphi 0, %s45
      %s46 = sphi 0, %s43
      %s47 = sphi 0, %s46
      %s63 = sphi 0, %s47
      %s67 = sphi 0, %s67
      %s69 = sphi 0, %s67
      %s70 = sphi 0, %s69
      %s84 = sphi 0, %s70
      %s90 = sphi 0, %s92
      %s93 = sphi 0, %s90
      %s94 = sphi 0, %s93
      %s110 = sphi 0, %s94
    $region4: #{tpu_custom_call.1} parent=1 // loop_header_branch
      %15 = sbr.rel (%p13) target = $region8
    $region5: #{tpu_custom_call.1} parent=1 // loop_body
      %s17 = ssub.s32 %s12, 1
      %s18 = ssub.s32 %s12, 2
      %s19 = sadd.s32 %s12, 1
      %s21 = sadd.s32 %s20, 1
      %p24 = scmp.eq.s32.totalorder %s12, 2
      %p25 = scmp.ne.s32.totalorder %s20, %s22
      %p26 = scmp.eq.s32.totalorder %s12, 0
      %p27 = por %p25, %p26
      %p28 = scmp.ne.s32.totalorder %s20, %s22
      %p29 = scmp.eq.s32.totalorder %s17, 2
      %p30 = por %p28, %p29
      %p31 = scmp.ne.s32.totalorder %s22, %s23
      %p32 = scmp.eq.s32.totalorder %s17, 0
      %p33 = por %p31, %p32
      %p34 = scmp.ne.s32.totalorder %s22, %s23
      %p35 = scmp.eq.s32.totalorder %s18, 2
      %p36 = por %p34, %p35
      %p38 = scmp.ne.s32.totalorder %s23, %s37
      %p39 = scmp.eq.s32.totalorder %s18, 0
      %p40 = por %p38, %p39
      %s41 = ssub.s32 %s12, %s19
      %p42 = scmp.eq.s32.totalorder %s41, 0
      %s44 = sadd.s32 %s43, 1
      %s45 = scalar_select %p42, %s43, %s44
      %p48 = pneg %p42
      %p49 = scmp.eq.s32.totalorder %s12, 2
      %p50 = por %p48, %p49
      %p51 = scmp.ne.s32.totalorder %s43, %s46
      %p52 = scmp.eq.s32.totalorder %s12, 0
      %p53 = por %p51, %p52
      %p54 = scmp.ne.s32.totalorder %s43, %s46
      %p55 = scmp.eq.s32.totalorder %s17, 2
      %p56 = por %p54, %p55
      %p57 = scmp.ne.s32.totalorder %s46, %s47
      %p58 = scmp.eq.s32.totalorder %s17, 0
      %p59 = por %p57, %p58
      %p60 = scmp.ne.s32.totalorder %s46, %s47
      %p61 = scmp.eq.s32.totalorder %s18, 2
      %p62 = por %p60, %p61
      %p64 = scmp.ne.s32.totalorder %s47, %s63
      %p65 = scmp.eq.s32.totalorder %s18, 0
      %p66 = por %p64, %p65
      %s68 = sadd.s32 %s67, 1
      %p71 = scmp.eq.s32.totalorder %s12, 2
      %p72 = scmp.ne.s32.totalorder %s67, %s69
      %p73 = scmp.eq.s32.totalorder %s12, 0
      %p74 = por %p72, %p73
      %p75 = scmp.ne.s32.totalorder %s67, %s69
      %p76 = scmp.eq.s32.totalorder %s17, 2
      %p77 = por %p75, %p76
      %p78 = scmp.ne.s32.totalorder %s69, %s70
      %p79 = scmp.eq.s32.totalorder %s17, 0
      %p80 = por %p78, %p79
      %p81 = scmp.ne.s32.totalorder %s69, %s70
      %p82 = scmp.eq.s32.totalorder %s18, 2
      %p83 = por %p81, %p82
      %p85 = scmp.ne.s32.totalorder %s70, %s84
      %p86 = scmp.eq.s32.totalorder %s18, 0
      %p87 = por %p85, %p86
      %s88 = ssub.s32 %s12, %s19
      %p89 = scmp.eq.s32.totalorder %s88, 0
      %s91 = sadd.s32 %s90, 1
      %s92 = scalar_select %p89, %s90, %s91
      %p95 = pneg %p89
      %p96 = scmp.eq.s32.totalorder %s12, 2
      %p97 = por %p95, %p96
      %p98 = scmp.ne.s32.totalorder %s90, %s93
      %p99 = scmp.eq.s32.totalorder %s12, 0
      %p100 = por %p98, %p99
      %p101 = scmp.ne.s32.totalorder %s90, %s93
      %p102 = scmp.eq.s32.totalorder %s17, 2
      %p103 = por %p101, %p102
      %p104 = scmp.ne.s32.totalorder %s93, %s94
      %p105 = scmp.eq.s32.totalorder %s17, 0
      %p106 = por %p104, %p105
      %p107 = scmp.ne.s32.totalorder %s93, %s94
      %p108 = scmp.eq.s32.totalorder %s18, 2
      %p109 = por %p107, %p108
      %p111 = scmp.ne.s32.totalorder %s94, %s110
      %p112 = scmp.eq.s32.totalorder %s18, 0
      %p113 = por %p111, %p112
      %p114 = scmp.le.s32.totalorder 1, %s12
      %p115 = scmp.lt.s32.totalorder %s12, 4
      %p116 = pnand %p114, %p115
      %p117 = pneg %p116
      // Predicated region
      $region9: #{tpu_custom_call.1} parent=5 // pred_check
        _
      $region10: #{tpu_custom_call.1} parent=5 // pred_check_branch
        %119 = sbr.rel (%p116) target = $region12
      $region11: #{tpu_custom_call.1} parent=5 // pred_region
        %s120 = ssub.s32 %s12, 1
        // Predicated region
        $region13: #{tpu_custom_call.1} parent=11 // pred_check
          %p121 = pneg %p33
        $region14: #{tpu_custom_call.1} parent=11 // pred_check_branch
          %123 = sbr.rel (%p121) target = $region16
        $region15: #{tpu_custom_call.1} parent=11 // pred_region
          _
        $region16: #{tpu_custom_call.1} parent=11 // pred_fallthru
          _
        // Predicated region
        $region17: #{tpu_custom_call.1} parent=11 // pred_check
          %p124 = pneg %p80
        $region18: #{tpu_custom_call.1} parent=11 // pred_check_branch
          %126 = sbr.rel (%p124) target = $region20
        $region19: #{tpu_custom_call.1} parent=11 // pred_region
          _
        $region20: #{tpu_custom_call.1} parent=11 // pred_fallthru
          _
      $region12: #{tpu_custom_call.1} parent=5 // pred_fallthru
        _
      %p127 = scmp.lt.s32.totalorder %s12, 3
      // Predicated region
      $region21: #{tpu_custom_call.1} parent=5 // pred_check
        %p128 = pneg %p127
      $region22: #{tpu_custom_call.1} parent=5 // pred_check_branch
        %130 = sbr.rel (%p128) target = $region24
      $region23: #{tpu_custom_call.1} parent=5 // pred_region
        // Predicated region
        $region25: #{tpu_custom_call.1} parent=23 // pred_check
          %p131 = pneg %p53
        $region26: #{tpu_custom_call.1} parent=23 // pred_check_branch
          %133 = sbr.rel (%p131) target = $region28
        $region27: #{tpu_custom_call.1} parent=23 // pred_region
          %s134 = smul.u32 16, %s12
          %s135 = ssub.s32 38, %s134
          %p136 = scmp.lt.s32.totalorder %s135, 16
          %s137 = scalar_select %p136, %s135, 16
          %s138 = smul.u32 128, %s137
          %p139 = scmp.lt.s32.totalorder %s134, 37
          %s140 = scalar_select %p139, %s134, 37
          %s141 = smul.addr %s140, 8
          %s142 = scalar_lea.vmem %s1, %s141
          %s143 = smul.u32 16, %s12
          %s144 = ssub.s32 38, %s143
          %p145 = scmp.lt.s32.totalorder %s144, 16
          %s146 = scalar_select %p145, %s144, 16
          %s147 = smul.u32 128, %s146
        $region28: #{tpu_custom_call.1} parent=23 // pred_fallthru
          _
      $region24: #{tpu_custom_call.1} parent=5 // pred_fallthru
        _
      %p148 = scmp.le.s32.totalorder 1, %s12
      %p149 = scmp.lt.s32.totalorder %s12, 4
      %p150 = pnand %p148, %p149
      %p151 = pneg %p150
      // Predicated region
      $region29: #{tpu_custom_call.1} parent=5 // pred_check
        _
      $region30: #{tpu_custom_call.1} parent=5 // pred_check_branch
        %153 = sbr.rel (%p150) target = $region32
      $region31: #{tpu_custom_call.1} parent=5 // pred_region
        %s154 = ssub.s32 %s12, 1
        %p155 = pneg %p33
        %p156 = pneg %p30
        %s157 = smul.u32 16, %s17
        %s158 = ssub.s32 38, %s157
        %p159 = scmp.lt.s32.totalorder %s158, 16
        %s160 = scalar_select %p159, %s158, 16
        %s161 = smul.u32 128, %s160
        %p162 = scmp.lt.s32.totalorder %s157, 37
        %s163 = scalar_select %p162, %s157, 37
        %s164 = smul.addr %s163, 8
        %s165 = scalar_lea.vmem %s1, %s164
        %p166 = pneg %p59
        %p167 = pneg %p56
        %p168 = pneg %p80
        %p169 = pneg %p77
        %p170 = pneg %p106
        %p171 = pneg %p103
        %s172 = sand.u32 %s93, 1
        %s173 = scalar_lea.sflag [#allocation3], %s172
        %s174 = sand.u32 %s93, 1
        %s175 = smul.addr %s174, 8
        %s176 = scalar_lea.vmem [#allocation2], %s175
        %s177 = smul.u32 16, %s17
        %s178 = ssub.s32 38, %s177
        %p179 = scmp.lt.s32.totalorder %s178, 16
        %s180 = scalar_select %p179, %s178, 16
        %s181 = smul.u32 128, %s180
        %p182 = scmp.lt.s32.totalorder %s177, 37
        %s183 = scalar_select %p182, %s177, 37
        %s184 = smul.addr %s183, 8
        %s185 = scalar_lea.vmem %s1, %s184
        %s186 = smul.u32 16, %s17
        %s187 = ssub.s32 38, %s186
        %p188 = scmp.lt.s32.totalorder %s187, 16
        %s189 = scalar_select %p188, %s187, 16
        %s190 = smul.u32 128, %s189
        %v191 = vld [vmem:[%s0] sm:$0xff]
        %v192 = vld [vmem:[%s185] sm:$0xff]
        %v193 = vld [vmem:[%s185 + $0x8] sm:$0xff]
        %v194 = vld [vmem:[%s185 + $0x10] sm:$0xff]
        %v195 = vld [vmem:[%s185 + $0x18] sm:$0xff]
        %v196 = vld [vmem:[%s185 + $0x20] sm:$0xff]
        %v197 = vld [vmem:[%s185 + $0x28] sm:$0xff]
        %v198 = vld [vmem:[%s185 + $0x30] sm:$0xff]
        %v199 = vld [vmem:[%s185 + $0x38] sm:$0xff]
        %v200 = vld [vmem:[%s185 + $0x40] sm:$0xff]
        %v201 = vld [vmem:[%s185 + $0x48] sm:$0xff]
        %v202 = vld [vmem:[%s185 + $0x50] sm:$0xff]
        %v203 = vld [vmem:[%s185 + $0x58] sm:$0xff]
        %v204 = vld [vmem:[%s185 + $0x60] sm:$0xff]
        %v205 = vld [vmem:[%s185 + $0x68] sm:$0xff]
        %v206 = vld [vmem:[%s185 + $0x70] sm:$0xff]
        %v207 = vld [vmem:[%s185 + $0x78] sm:$0xff]
        %v208 = vmul.f32 %v192, %v192
        %v209 = vmul.f32 %v193, %v193
        %v210 = vmul.f32 %v194, %v194
        %v211 = vmul.f32 %v195, %v195
        %v212 = vmul.f32 %v196, %v196
        %v213 = vmul.f32 %v197, %v197
        %v214 = vmul.f32 %v198, %v198
        %v215 = vmul.f32 %v199, %v199
        %v216 = vmul.f32 %v200, %v200
        %v217 = vmul.f32 %v201, %v201
        %v218 = vmul.f32 %v202, %v202
        %v219 = vmul.f32 %v203, %v203
        %v220 = vmul.f32 %v204, %v204
        %v221 = vmul.f32 %v205, %v205
        %v222 = vmul.f32 %v206, %v206
        %v223 = vmul.f32 %v207, %v207
        %vm224 = vcmask 261120
        %v225 = vsel %vm224, %v208, 0.0
        %226 = vadd.xlane.f32.xlu0 %v225
        %v227 = vpop.xlane.xlu0 %226
        %v228 = vsel %vm224, %v209, 0.0
        %229 = vadd.xlane.f32.xlu0 %v228
        %v230 = vpop.xlane.xlu0 %229
        %v231 = vsel %vm224, %v210, 0.0
        %232 = vadd.xlane.f32.xlu0 %v231
        %v233 = vpop.xlane.xlu0 %232
        %v234 = vsel %vm224, %v211, 0.0
        %235 = vadd.xlane.f32.xlu0 %v234
        %v236 = vpop.xlane.xlu0 %235
        %v237 = vsel %vm224, %v212, 0.0
        %238 = vadd.xlane.f32.xlu0 %v237
        %v239 = vpop.xlane.xlu0 %238
        %v240 = vsel %vm224, %v213, 0.0
        %241 = vadd.xlane.f32.xlu0 %v240
        %v242 = vpop.xlane.xlu0 %241
        %v243 = vsel %vm224, %v214, 0.0
        %244 = vadd.xlane.f32.xlu0 %v243
        %v245 = vpop.xlane.xlu0 %244
        %v246 = vsel %vm224, %v215, 0.0
        %247 = vadd.xlane.f32.xlu0 %v246
        %v248 = vpop.xlane.xlu0 %247
        %v249 = vsel %vm224, %v216, 0.0
        %250 = vadd.xlane.f32.xlu0 %v249
        %v251 = vpop.xlane.xlu0 %250
        %v252 = vsel %vm224, %v217, 0.0
        %253 = vadd.xlane.f32.xlu0 %v252
        %v254 = vpop.xlane.xlu0 %253
        %v255 = vsel %vm224, %v218, 0.0
        %256 = vadd.xlane.f32.xlu0 %v255
        %v257 = vpop.xlane.xlu0 %256
        %v258 = vsel %vm224, %v219, 0.0
        %259 = vadd.xlane.f32.xlu0 %v258
        %v260 = vpop.xlane.xlu0 %259
        %v261 = vsel %vm224, %v220, 0.0
        %262 = vadd.xlane.f32.xlu0 %v261
        %v263 = vpop.xlane.xlu0 %262
        %v264 = vsel %vm224, %v221, 0.0
        %265 = vadd.xlane.f32.xlu0 %v264
        %v266 = vpop.xlane.xlu0 %265
        %v267 = vsel %vm224, %v222, 0.0
        %268 = vadd.xlane.f32.xlu0 %v267
        %v269 = vpop.xlane.xlu0 %268
        %v270 = vsel %vm224, %v223, 0.0
        %271 = vadd.xlane.f32.xlu0 %v270
        %v272 = vpop.xlane.xlu0 %271
        %v273 = vmax.f32 %v227, 1e-24
        %v274 = vmax.f32 %v230, 1e-24
        %v275 = vmax.f32 %v233, 1e-24
        %v276 = vmax.f32 %v236, 1e-24
        %v277 = vmax.f32 %v239, 1e-24
        %v278 = vmax.f32 %v242, 1e-24
        %v279 = vmax.f32 %v245, 1e-24
        %v280 = vmax.f32 %v248, 1e-24
        %v281 = vmax.f32 %v251, 1e-24
        %v282 = vmax.f32 %v254, 1e-24
        %v283 = vmax.f32 %v257, 1e-24
        %v284 = vmax.f32 %v260, 1e-24
        %v285 = vmax.f32 %v263, 1e-24
        %v286 = vmax.f32 %v266, 1e-24
        %v287 = vmax.f32 %v269, 1e-24
        %v288 = vmax.f32 %v272, 1e-24
        %v289 = vrsqrt.pop %v273
        %v290 = vrsqrt.pop %v274
        %v291 = vrsqrt.pop %v275
        %v292 = vrsqrt.pop %v276
        %v293 = vrsqrt.pop %v277
        %v294 = vrsqrt.pop %v278
        %v295 = vrsqrt.pop %v279
        %v296 = vrsqrt.pop %v280
        %v297 = vrsqrt.pop %v281
        %v298 = vrsqrt.pop %v282
        %v299 = vrsqrt.pop %v283
        %v300 = vrsqrt.pop %v284
        %v301 = vrsqrt.pop %v285
        %v302 = vrsqrt.pop %v286
        %v303 = vrsqrt.pop %v287
        %v304 = vrsqrt.pop %v288
        %v305 = vmul.f32 %v192, %v289
        %v306 = vmul.f32 %v193, %v290
        %v307 = vmul.f32 %v194, %v291
        %v308 = vmul.f32 %v195, %v292
        %v309 = vmul.f32 %v196, %v293
        %v310 = vmul.f32 %v197, %v294
        %v311 = vmul.f32 %v198, %v295
        %v312 = vmul.f32 %v199, %v296
        %v313 = vmul.f32 %v200, %v297
        %v314 = vmul.f32 %v201, %v298
        %v315 = vmul.f32 %v202, %v299
        %v316 = vmul.f32 %v203, %v300
        %v317 = vmul.f32 %v204, %v301
        %v318 = vmul.f32 %v205, %v302
        %v319 = vmul.f32 %v206, %v303
        %v320 = vmul.f32 %v207, %v304
        %v322 = vsel %vm224, %v191, 0
        %v325 = vsel %vm224, %v305, 0
        %v328 = vsel %vm224, %v306, 0
        %v331 = vsel %vm224, %v307, 0
        %v334 = vsel %vm224, %v308, 0
        %v337 = vsel %vm224, %v309, 0
        %v340 = vsel %vm224, %v310, 0
        %v343 = vsel %vm224, %v311, 0
        %v346 = vsel %vm224, %v312, 0
        %v349 = vsel %vm224, %v313, 0
        %v352 = vsel %vm224, %v314, 0
        %v355 = vsel %vm224, %v315, 0
        %v358 = vsel %vm224, %v316, 0
        %v361 = vsel %vm224, %v317, 0
        %v364 = vsel %vm224, %v318, 0
        %v367 = vsel %vm224, %v319, 0
        %v370 = vsel %vm224, %v320, 0
        %372 = vmatprep.subr.mxu0 0.0
        %373 = vmatpush1.xpose.msra.mxu0 %v325
        %374 = vmatprep.subr.mxu0 0.0
        %375 = vmatpush1.xpose.msra.mxu0 %v328
        %376 = vmatprep.subr.mxu0 0.0
        %377 = vmatpush1.xpose.msra.mxu0 %v331
        %378 = vmatprep.subr.mxu0 0.0
        %379 = vmatpush1.xpose.msra.mxu0 %v334
        %380 = vmatprep.subr.mxu0 0.0
        %381 = vmatpush1.xpose.msra.mxu0 %v337
        %382 = vmatprep.subr.mxu0 0.0
        %383 = vmatpush1.xpose.msra.mxu0 %v340
        %384 = vmatprep.subr.mxu0 0.0
        %385 = vmatpush1.xpose.msra.mxu0 %v343
        %386 = vmatprep.subr.mxu0 0.0
        %387 = vmatpush1.xpose.msra.mxu0 %v346
        %388 = vmatprep.subr.mxu0 0.0
        %389 = vmatpush1.xpose.msra.mxu0 %v349
        %390 = vmatprep.subr.mxu0 0.0
        %391 = vmatpush1.xpose.msra.mxu0 %v352
        %392 = vmatprep.subr.mxu0 0.0
        %393 = vmatpush1.xpose.msra.mxu0 %v355
        %394 = vmatprep.subr.mxu0 0.0
        %395 = vmatpush1.xpose.msra.mxu0 %v358
        %396 = vmatprep.subr.mxu0 0.0
        %397 = vmatpush1.xpose.msra.mxu0 %v361
        %398 = vmatprep.subr.mxu0 0.0
        %399 = vmatpush1.xpose.msra.mxu0 %v364
        %400 = vmatprep.subr.mxu0 0.0
        %401 = vmatpush1.xpose.msra.mxu0 %v367
        %402 = vmatprep.subr.mxu0 0.0
        %403 = vmatpush1.xpose.msra.mxu0 %v370
        %404 = vmatprep.subr.mxu0 0.0
        %405 = vmatpush1.xpose.msra.mxu0 0.0
        %406 = vmatprep.subr.mxu0 0.0
        %407 = vmatpush1.xpose.msra.mxu0 0.0
        %408 = vmatprep.subr.mxu0 0.0
        %409 = vmatpush1.xpose.msra.mxu0 0.0
        %410 = vmatprep.subr.mxu0 0.0
        %411 = vmatpush1.xpose.msra.mxu0 0.0
        %412 = vmatprep.subr.mxu0 0.0
        %413 = vmatpush1.xpose.msra.mxu0 0.0
        %414 = vmatprep.subr.mxu0 0.0
        %415 = vmatpush1.xpose.msra.mxu0 0.0
        %416 = vmatprep.subr.mxu0 0.0
        %417 = vmatpush1.xpose.msra.mxu0 0.0
        %418 = vmatprep.subr.mxu0 0.0
        %419 = vmatpush1.xpose.msra.mxu0 0.0
        %420 = vmatprep.subr.mxu0 0.0
        %421 = vmatpush1.xpose.msra.mxu0 0.0
        %422 = vmatprep.subr.mxu0 0.0
        %423 = vmatpush1.xpose.msra.mxu0 0.0
        %424 = vmatprep.subr.mxu0 0.0
        %425 = vmatpush1.xpose.msra.mxu0 0.0
        %426 = vmatprep.subr.mxu0 0.0
        %427 = vmatpush1.xpose.msra.mxu0 0.0
        %428 = vmatprep.subr.mxu0 0.0
        %429 = vmatpush1.xpose.msra.mxu0 0.0
        %430 = vmatprep.subr.mxu0 0.0
        %431 = vmatpush1.xpose.msra.mxu0 0.0
        %432 = vmatprep.subr.mxu0 0.0
        %433 = vmatpush1.xpose.msra.mxu0 0.0
        %434 = vmatprep.subr.mxu0 0.0
        %435 = vmatpush1.xpose.msra.mxu0 0.0
        %436 = vmatprep.mubr.f32.mxu0 0.0
        %437 = vmatmul.mubr.f32.gmra.mrb[0].mxu0 %v322
        %v438 = vpop.f32.mrb[0].mxu0
        %v439 = vadd.f32 0.0, %v438
        %v440 = vpop.f32.mrb[0].mxu0
        %441 = vdwg.mxu0
        %v442 = vld [vmem:[%s2] sm:$0xff]
        %s443 = smul.u32 %s17, 128
        %v444 = vstv %s443
        %v445 = vsub.s32 %v442, %v444
        %v446 = vlaneseq
        %v447 = vand.u32 %v446, 127
        %448 = vset.pattern.permute.xlu0 0
        %449 = vperm.xlu0 %448, %v445
        %v450 = vpop.permute.xlu0 %449
        %vm451 = vcmp.eq.s32.totalorder %v447, %v450
        %v452 = vsel %vm451, %v439, 0.0
        %453 = vadd.xlane.f32.xlu0 %v452
        %v454 = vpop.xlane.xlu0 %453
        %v455 = vmax.f32 %v454, -0.9999999
        %v456 = vmin.f32 %v455, 0.9999999
        %v457 = vmul.f32 %v456, 0.87758255
        %v458 = vmul.f32 %v456, %v456
        %v459 = vsub.f32 1.0, %v458
        %v460 = vrsqrt.pop %v459
        %v461 = vmul.f32 %v459, %v460
        %vm462 = vcmp.eq.f32.partialorder %v459, inf
        %v463 = vsel %vm462, %v459, %v461
        %vm464 = vcmp.eq.f32.partialorder %v459, 0.0
        %v465 = vand.u32 %v459, 2147483648
        %v466 = vsel %vm464, %v465, %v463
        %v467 = vmul.f32 %v466, 0.47942555
        %v468 = vsub.f32 %v457, %v467
        %v469 = vsel %vm451, %v468, %v439
        %v470 = vmul.f32 %v469, 30.0
        %471 = vst [vmem:[%s176] sm:$0xff] %v470
        %s472 = sand.u32 %s93, 1
        %s473 = scalar_lea.sflag [#allocation3], %s472
        %s474 = sand.u32 %s93, 1
        %s475 = smul.addr %s474, 8
        %s476 = scalar_lea.vmem [#allocation2], %s475
        // Predicated region
        $region33: #{tpu_custom_call.1} parent=31 // pred_check
          %p477 = pneg %p103
        $region34: #{tpu_custom_call.1} parent=31 // pred_check_branch
          %479 = sbr.rel (%p477) target = $region36
        $region35: #{tpu_custom_call.1} parent=31 // pred_region
          %s481 = ssub.s32 128, 128
          %482 = vsyncadd %s473, %s481
          %s483 = smul.addr %s17, 128
          %s484 = scalar_lea.hbm %s3, %s483
          %s486 = sshll.u32 %s476, 4
          %s487 = int_to_ptr.vmem [resolvable:$true] %s486
          %489 = dma.vmem_to_hbm [thread:$0]  %s487, 128, %s484, %s473
        $region36: #{tpu_custom_call.1} parent=31 // pred_fallthru
          _
      $region32: #{tpu_custom_call.1} parent=5 // pred_fallthru
        _
      %p490 = scmp.le.s32.totalorder 2, %s12
      // Predicated region
      $region37: #{tpu_custom_call.1} parent=5 // pred_check
        %p491 = pneg %p490
      $region38: #{tpu_custom_call.1} parent=5 // pred_check_branch
        %493 = sbr.rel (%p491) target = $region40
      $region39: #{tpu_custom_call.1} parent=5 // pred_region
        %s494 = ssub.s32 %s12, 2
        // Predicated region
        $region41: #{tpu_custom_call.1} parent=39 // pred_check
          %p495 = pneg %p109
        $region42: #{tpu_custom_call.1} parent=39 // pred_check_branch
          %497 = sbr.rel (%p495) target = $region44
        $region43: #{tpu_custom_call.1} parent=39 // pred_region
          %s498 = sand.u32 %s94, 1
          %s499 = scalar_lea.sflag [#allocation3], %s498
          %s500 = sand.u32 %s94, 1
          %s501 = smul.addr %s500, 8
          %s502 = scalar_lea.vmem [#allocation2], %s501
          %503 = dma.done %s499, 128
        $region44: #{tpu_custom_call.1} parent=39 // pred_fallthru
          _
      $region40: #{tpu_custom_call.1} parent=5 // pred_fallthru
        _
    $region6: #{tpu_custom_call.1} parent=1 // loop_footer
      %s16 = sadd.s32 1, %s12
    $region7: #{tpu_custom_call.1} parent=1 // loop_footer_branch
      %11 = sbr.rel target = $region3
    $region8: #{tpu_custom_call.1} parent=1 // loop_exit
      _
    %504 = vsyncpa [#allocation3], 1
    %s505 = scalar_lea.sflag [#allocation3], 1
    %506 = vsyncpa %s505, 1

</llo_original>
